<compile_context>
chip_gen: v7x
topology: tpu7x:2x2x1
jax: 0.10.0
libtpu: 0.0.40
codegen_flags: <defaults>
</compile_context>

<pallas_src>
import functools

import jax
import jax.numpy as jnp
from jax.experimental import pallas as pl
from jax.experimental.pallas import tpu as pltpu


def _conv_bn_leaky_kernel(p_ref, w_ref, shift_ref, o_ref, *, neg_slope):
    # p_ref:     (1, 9*Cin, HW_tile)     im2col patches (bf16)
    # w_ref:     (Cout_tile, 9*Cin)      BN-scale-folded weights (bf16)
    # shift_ref: (Cout_tile, 1)          folded BN shift (f32)
    # o_ref:     (1, Cout_tile, HW_tile) output tile (lane dim = spatial)
    acc = jnp.dot(w_ref[...], p_ref[0],
                  preferred_element_type=jnp.float32)      # (Cout_t, HW_t) f32
    y = acc + shift_ref[...]                                # folded BN shift
    y = jnp.maximum(y, neg_slope * y)                       # LeakyReLU(0.1)
    o_ref[0] = y.astype(o_ref.dtype)


def _round_up(x, m):
    return -(-x // m) * m


def _tpu_generation():
    """Best-effort TPU generation detection ('v5e' / 'v6e' / 'v7x')."""
    try:
        kind = jax.devices()[0].device_kind.lower()
    except Exception:
        return "v6e"
    if "v5 lite" in kind or "v5e" in kind or "v5lite" in kind:
        return "v5e"
    if "7" in kind:          # e.g. "TPU7x"
        return "v7x"
    return "v6e"


def _pick_hw_tile(hw, target):
    """Pick (tile_hw, hw_padded).

    tile_hw is a multiple of 128 (lane-aligned), <= target, chosen so that it
    divides the zero-padded spatial extent; prefer minimal total padding, then
    the largest tile.  Always terminates with tile=128 / pad-to-128 worst case.
    """
    hw128 = _round_up(hw, 128)
    target = max(128, min(_round_up(target, 128), hw128))
    max_pad = max(128, hw // 8)          # accept <= ~12.5% zero padding
    best = None                          # (padded_total, -tile)
    t = target
    while t >= 128:
        padded = _round_up(hw, t)
        if padded - hw <= max_pad:
            cand = (padded, -t)
            if best is None or cand < best:
                best = cand
        t -= 128
    padded, neg_t = best
    return -neg_t, padded


def downsample_layer(x_nchw, weight_hwio, gamma, beta, running_mean,
                     running_var, *, eps=1e-5, neg_slope=0.1,
                     compute_dtype=jnp.bfloat16, out_dtype=None):
    """DownSampleLayer forward: Conv(3x3, s=2, p=1, no bias) + BN + LeakyReLU(0.1).

    x_nchw:      (N, Cin, H, W)   -- PyTorch layout
    weight_hwio: (3, 3, Cin, Cout)
    out_dtype:   defaults to x dtype; pass jnp.bfloat16 if the consumer is bf16
                 to halve output HBM traffic.
    returns:     (N, Cout, Hout, Wout) with Hout = (H+2-3)//2 + 1
    """
    n, c_in, h, w = x_nchw.shape
    kh_, kw_, c_in_w, c_out = weight_hwio.shape
    assert (kh_, kw_) == (3, 3) and c_in_w == c_in
    h_out = (h + 2 - 3) // 2 + 1
    w_out = (w + 2 - 3) // 2 + 1
    hw = h_out * w_out
    out_dtype = x_nchw.dtype if out_dtype is None else out_dtype

    # ---- generation-dependent tiling config --------------------------------
    gen = _tpu_generation()
    if gen == "v7x":        # 64 MiB VMEM, 3.2 TB/s HBM: keep working set tight
        tile_co_pref, hw_target = 256, 2048
        vmem_budget, vmem_limit = 24 << 20, 48 << 20
    elif gen == "v5e":      # 4x128^2 MXU: M=128; 128 MiB VMEM: larger tiles
        tile_co_pref, hw_target = 128, 4096
        vmem_budget, vmem_limit = 48 << 20, 80 << 20
    else:                   # v6e (default)
        tile_co_pref, hw_target = 256, 4096
        vmem_budget, vmem_limit = 48 << 20, 80 << 20

    # ---- wrapper-side prep (plain XLA glue, stays in NCHW) -----------------
    # Cast to bf16 BEFORE padding / tap extraction so the im2col buffer and
    # its intermediates are half-width.
    x_c = x_nchw.astype(compute_dtype)
    x_pad = jnp.pad(x_c, ((0, 0), (0, 0), (1, 1), (1, 1)))
    taps = [x_pad[:, :, kh:kh + 2 * h_out:2, kw:kw + 2 * w_out:2]
            for kh in range(3) for kw in range(3)]
    patches = jnp.stack(taps, axis=1).reshape(n, 9 * c_in, hw)   # (N, 9*Cin, HW)

    # Fold BatchNorm (inference) into the weights: scale -> W, shift stays.
    scale = (gamma.astype(jnp.float32)
             / jnp.sqrt(running_var.astype(jnp.float32) + eps))
    shift = (beta.astype(jnp.float32)
             - running_mean.astype(jnp.float32) * scale).reshape(c_out, 1)
    # (Cout, kh, kw, ci) flattened to (Cout, 9*Cin); ordering matches the patch
    # channel index (kh*3 + kw)*Cin + ci used above.
    w_t = jnp.transpose(weight_hwio, (3, 0, 1, 2)).reshape(c_out, 9 * c_in)
    w_folded = (w_t.astype(jnp.float32) * scale[:, None]).astype(compute_dtype)

    # ---- tiling ------------------------------------------------------------
    tile_co = c_out
    for cand in (tile_co_pref, 128):
        if cand <= c_out and c_out % cand == 0:
            tile_co = cand
            break

    in_b = jnp.dtype(compute_dtype).itemsize
    out_b = jnp.dtype(out_dtype).itemsize
    target = hw_target
    while True:
        tile_hw, hw_pad = _pick_hw_tile(hw, target)
        est = (2 * 9 * c_in * tile_hw * in_b          # patches (double-buffered)
               + 2 * tile_co * tile_hw * out_b        # output  (double-buffered)
               + tile_co * tile_hw * 4                # f32 accumulator temps
               + 2 * tile_co * 9 * c_in * in_b)       # weights
        if est <= vmem_budget or tile_hw <= 128:
            break
        target = max(128, tile_hw // 2)

    # Zero-pad the lane (spatial) dim to the tiled extent -> every store is a
    # full, unmasked, lane-dense vst; padded columns are sliced off below.
    if hw_pad != hw:
        patches = jnp.pad(patches, ((0, 0), (0, 0), (0, hw_pad - hw)))

    grid = (n, c_out // tile_co, hw_pad // tile_hw)
    kernel = functools.partial(_conv_bn_leaky_kernel, neg_slope=neg_slope)

    # On v7x (tight 64 MiB VMEM) the weight/shift blocks are invariant along
    # the innermost hw grid axis: single-buffer them to reclaim VMEM.
    wkw = {"pipeline_mode": pl.Buffered(1)} if gen == "v7x" else {}

    out_flat = pl.pallas_call(
        kernel,
        out_shape=jax.ShapeDtypeStruct((n, c_out, hw_pad), out_dtype),
        grid_spec=pltpu.PrefetchScalarGridSpec(
            num_scalar_prefetch=0,
            grid=grid,
            in_specs=[
                pl.BlockSpec((1, 9 * c_in, tile_hw),
                             lambda b, co, s: (b, 0, s)),
                pl.BlockSpec((tile_co, 9 * c_in),
                             lambda b, co, s: (co, 0), **wkw),
                pl.BlockSpec((tile_co, 1),
                             lambda b, co, s: (co, 0), **wkw),
            ],
            out_specs=pl.BlockSpec((1, tile_co, tile_hw),
                                   lambda b, co, s: (b, co, s)),
        ),
        compiler_params=pltpu.CompilerParams(
            dimension_semantics=("parallel", "parallel", "parallel"),
            vmem_limit_bytes=vmem_limit),
    )(patches, w_folded, shift)

    # Drop lane padding, then a pure metadata reshape back to NCHW.
    if hw_pad != hw:
        out_flat = out_flat[:, :, :hw]
    return out_flat.reshape(n, c_out, h_out, w_out)


def _reference(x, weight_hwio, gamma, beta, mean, var, eps=1e-5, slope=0.1):
    """Plain-JAX f32 reference (lax conv + inference BN + LeakyReLU)."""
    y = jax.lax.conv_general_dilated(
        x, jnp.transpose(weight_hwio, (3, 2, 0, 1)),   # HWIO -> OIHW
        window_strides=(2, 2), padding=((1, 1), (1, 1)),
        dimension_numbers=("NCHW", "OIHW", "NCHW"))
    scale = gamma / jnp.sqrt(var + eps)
    shift = beta - mean * scale
    y = y * scale[None, :, None, None] + shift[None, :, None, None]
    return jnp.where(y > 0, y, slope * y)


def _make_inputs(key, n, c_in, c_out, h, w):
    k_x, k_w, k_g, k_b, k_m, k_v = jax.random.split(key, 6)
    x = jax.random.normal(k_x, (n, c_in, h, w), dtype=jnp.float32)
    weight = jax.random.normal(k_w, (3, 3, c_in, c_out), dtype=jnp.float32) * 0.1
    gamma = 1.0 + 0.1 * jax.random.normal(k_g, (c_out,), dtype=jnp.float32)
    beta = 0.1 * jax.random.normal(k_b, (c_out,), dtype=jnp.float32)
    running_mean = 0.1 * jax.random.normal(k_m, (c_out,), dtype=jnp.float32)
    running_var = jnp.abs(1.0 + 0.1 * jax.random.normal(k_v, (c_out,),
                                                        dtype=jnp.float32))
    return x, weight, gamma, beta, running_mean, running_var


if __name__ == "__main__":
    key = jax.random.PRNGKey(0)
    k1, k2 = jax.random.split(key)

    # Case 1: small canonical shapes (even spatial, exact lane padding 64->128).
    x, wgt, g, b, m, v = _make_inputs(k1, 2, 4, 8, 16, 16)
    out = downsample_layer(x, wgt, g, b, m, v)
    jax.block_until_ready(out)
    ref = _reference(x, wgt, g, b, m, v)
    assert out.shape == (2, 8, 8, 8)
    # bf16 matmul inputs (f32 accumulation) -> loosened tolerance vs f32 ref.
    assert jnp.allclose(out, ref, atol=5e-2, rtol=5e-2)

    # Case 2: odd spatial (26 -> 13, hw=169): exercises lane padding to 256,
    # unmasked stores on the padded extent, and the slice-back path.
    x2, wgt2, g2, b2, m2, v2 = _make_inputs(k2, 1, 16, 32, 26, 26)
    out2 = downsample_layer(x2, wgt2, g2, b2, m2, v2)
    jax.block_until_ready(out2)
    ref2 = _reference(x2, wgt2, g2, b2, m2, v2)
    assert out2.shape == (1, 32, 13, 13)
    assert jnp.allclose(out2, ref2, atol=5e-2, rtol=5e-2)

    print("KERNEL_OK")
</pallas_src>

<mosaic_0001>
module attributes {stable_mosaic.version = 11 : i64} {
  func.func @_conv_bn_leaky_kernel(%arg0: i32, %arg1: i32, %arg2: i32, %arg3: memref<1x36x128xbf16, #tpu.memory_space<vmem>>, %arg4: memref<8x36xbf16, #tpu.memory_space<vmem>>, %arg5: memref<8x1xf32, #tpu.memory_space<vmem>>, %arg6: memref<1x8x128xf32, #tpu.memory_space<vmem>>) attributes {dimension_semantics = [#tpu.dimension_semantics<parallel>, #tpu.dimension_semantics<parallel>, #tpu.dimension_semantics<parallel>], iteration_bounds = array<i64: 2, 1, 1>, scalar_prefetch = 0 : i64, scratch_operands = 0 : i64, tpu.core_type = #tpu.core_type<tc>, window_params = [{transform_indices = @transform_0, window_bounds = array<i64: 1, 36, 128>}, {transform_indices = @transform_1, window_bounds = array<i64: 8, 36>}, {transform_indices = @transform_2, window_bounds = array<i64: 8, 1>}, {transform_indices = @transform_3, window_bounds = array<i64: 1, 8, 128>}]} {
    %c0 = arith.constant 0 : index
    %c0_0 = arith.constant 0 : index
    %0 = vector.load %arg4[%c0, %c0_0] : memref<8x36xbf16, #tpu.memory_space<vmem>>, vector<8x36xbf16>
    %c0_1 = arith.constant 0 : index
    %c0_2 = arith.constant 0 : index
    %c0_3 = arith.constant 0 : index
    %1 = vector.load %arg3[%c0_1, %c0_2, %c0_3] : memref<1x36x128xbf16, #tpu.memory_space<vmem>>, vector<1x36x128xbf16>
    %2 = vector.shape_cast %1 : vector<1x36x128xbf16> to vector<36x128xbf16>
    %cst = arith.constant dense<0.000000e+00> : vector<8x128xf32>
    %3 = tpu.matmul %0, %2, %cst {dimension_numbers = #tpu.dot_dimension_numbers<[1], [0], [0], [1], [0, 0, 1, 1], [], []>} : vector<8x36xbf16>, vector<36x128xbf16>, vector<8x128xf32> -> vector<8x128xf32>
    %c0_4 = arith.constant 0 : index
    %c0_5 = arith.constant 0 : index
    %4 = vector.load %arg5[%c0_4, %c0_5] : memref<8x1xf32, #tpu.memory_space<vmem>>, vector<8x1xf32>
    %5 = vector.broadcast %4 : vector<8x1xf32> to vector<8x128xf32>
    %6 = arith.addf %3, %5 : vector<8x128xf32>
    %cst_6 = arith.constant 1.000000e-01 : f32
    %7 = vector.broadcast %cst_6 : f32 to vector<8x128xf32>
    %8 = arith.mulf %7, %6 : vector<8x128xf32>
    %9 = arith.maximumf %6, %8 : vector<8x128xf32>
    %c0_7 = arith.constant 0 : index
    %c0_8 = arith.constant 0 : index
    %c0_9 = arith.constant 0 : index
    %10 = vector.load %arg6[%c0_7, %c0_8, %c0_9] : memref<1x8x128xf32, #tpu.memory_space<vmem>>, vector<1x8x128xf32>
    %11 = vector.shape_cast %10 : vector<1x8x128xf32> to vector<8x128xf32>
    %12 = vector.shape_cast %9 : vector<8x128xf32> to vector<1x8x128xf32>
    tpu.vector_store %arg6[%c0_7, %c0_8, %c0_9], %12 {strides = array<i32>} : memref<1x8x128xf32, #tpu.memory_space<vmem>>, vector<1x8x128xf32>,
    return
  }
  func.func @transform_0(%arg0: i32, %arg1: i32, %arg2: i32) -> (i32, i32, i32) {
    %c0_i32 = arith.constant 0 : i32
    %c0_i32_0 = arith.constant 0 : i32
    return %arg0, %c0_i32, %arg2 : i32, i32, i32
  }
  func.func @transform_1(%arg0: i32, %arg1: i32, %arg2: i32) -> (i32, i32) {
    %c0_i32 = arith.constant 0 : i32
    %c0_i32_0 = arith.constant 0 : i32
    return %arg1, %c0_i32 : i32, i32
  }
  func.func @transform_2(%arg0: i32, %arg1: i32, %arg2: i32) -> (i32, i32) {
    %c0_i32 = arith.constant 0 : i32
    %c0_i32_0 = arith.constant 0 : i32
    return %arg1, %c0_i32 : i32, i32
  }
  func.func @transform_3(%arg0: i32, %arg1: i32, %arg2: i32) -> (i32, i32, i32) {
    %c0_i32 = arith.constant 0 : i32
    return %arg0, %arg1, %arg2 : i32, i32, i32
  }
}

</mosaic_0001>

<llo_original>
// kernel: tpu_custom_call.1
$region0: #{tpu_custom_call.1}
  #allocation0 [shape = 'u32[]', space=smem, size = 0x4, offset = 0x4, fixed_abs, tag = 'smem constant byte address 0x4 - core index']
  #allocation1 [shape = 'u32[144,128]{1,0:T(1,128)}', space=vmem, size = 0x12000, scoped, tag = 'internal scratch']
  %s0 = inlined_call_operand.hbm [shape: bf16[2,36,128], index: 0, kind: input, shape index: {}]
  %s1 = inlined_call_operand.hbm [shape: bf16[8,36], index: 1, kind: input, shape index: {}]
  %s2 = inlined_call_operand.hbm [shape: f32[8,1], index: 2, kind: input, shape index: {}]
  %s3 = inlined_call_operand.hbm [shape: f32[2,8,128], index: 3, kind: output, shape index: {}]
  %s4 = sld [smem:[#allocation0]]
  $region57: #{tpu_custom_call.1} parent=0
    _
  %s6 = ssub.s32 1, %s4
  %s7 = scalar_select 0, %s6, %s4
  $region1: #{tpu_custom_call.1} parent=0
    #allocation2 [shape = 'u8[20480]{0}', space=vmem, size = 0x5000, scoped, tag = 'input window, operand 0']
    #allocation3 [shape = 's32[2]{0}', space=sflag, size = 0x8, scoped, tag = 'scoped memory for tpu_custom_call.1']
    #allocation4 [shape = 's32[2]{0}', space=sflag, size = 0x8, scoped, tag = 'scoped memory for tpu_custom_call.1']
    #allocation5 [shape = 'u8[2048]{0}', space=vmem, size = 0x800, scoped, tag = 'input window, operand 1, single buffered']
    #allocation6 [shape = 's32[1]{0}', space=sflag, size = 0x4, scoped, tag = 'scoped memory for tpu_custom_call.1']
    #allocation7 [shape = 'u8[4096]{0}', space=vmem, size = 0x1000, scoped, tag = 'input window, operand 2, single buffered']
    #allocation8 [shape = 'u8[8192]{0}', space=vmem, size = 0x2000, scoped, tag = 'output window, operand 0']
    %8 = vsyncpa [#allocation3], 0
    %s9 = scalar_lea.sflag [#allocation3], 1
    %10 = vsyncpa %s9, 0
    %11 = vsyncpa [#allocation6], 0
    %12 = vsyncpa [#allocation4], 0
    %s13 = scalar_lea.sflag [#allocation4], 1
    %14 = vsyncpa %s13, 0
    loop: start=0, step=1, limit=4
    $region2: #{tpu_custom_call.1} parent=1 // loop_pre_header
      _
    $region3: #{tpu_custom_call.1} parent=1 // loop_header
      %s16 = sphi 0, %s20
      %p17 = scmp.ge.s32.totalorder %s16, 4
      %s23 = sphi 0, %s42
      %s24 = sphi 0, %s38
      %s25 = sphi 0, %s34
      %s26 = sphi 0, %s23
      %s27 = sphi 0, %s24
      %s28 = sphi 0, %s25
      %s29 = sphi 0, %s26
      %s30 = sphi 0, %s27
      %s31 = sphi 0, %s28
      %s47 = sphi 0, %s49
      %s50 = sphi 0, %s47
      %s51 = sphi 0, %s50
      %s67 = sphi 0, %s51
      %s73 = sphi 0, %s75
      %s76 = sphi 0, %s73
      %s77 = sphi 0, %s76
      %s93 = sphi 0, %s77
      %s99 = sphi 0, %s101
      %s102 = sphi 0, %s99
      %s103 = sphi 0, %s102
      %s119 = sphi 0, %s103
      %s129 = sphi 0, %s131
      %s132 = sphi 0, %s129
      %s133 = sphi 0, %s132
      %s149 = sphi 0, %s133
    $region4: #{tpu_custom_call.1} parent=1 // loop_header_branch
      %19 = sbr.rel (%p17) target = $region8
    $region5: #{tpu_custom_call.1} parent=1 // loop_body
      %s21 = ssub.s32 %s16, 1
      %s22 = ssub.s32 %s16, 2
      %s32 = sadd.s32 1, %s25
      %p33 = scmp.ge.s32.totalorder %s32, 1
      %s34 = scalar_select %p33, 0, %s32
      %s35 = sadd.s32 1, %s24
      %s36 = scalar_select %p33, %s35, %s24
      %p37 = scmp.ge.s32.totalorder %s36, 1
      %s38 = scalar_select %p37, 0, %s36
      %s39 = sadd.s32 1, %s23
      %s40 = scalar_select %p37, %s39, %s23
      %p41 = scmp.ge.s32.totalorder %s40, 2
      %s42 = scalar_select %p41, 0, %s40
      %s43 = ssub.s32 %s23, %s42
      %s44 = ssub.s32 %s25, %s34
      %s45 = sor.u32 %s43, %s44
      %p46 = scmp.eq.s32.totalorder %s45, 0
      %s48 = sadd.s32 %s47, 1
      %s49 = scalar_select %p46, %s47, %s48
      %p52 = pneg %p46
      %p53 = scmp.eq.s32.totalorder %s16, 1
      %p54 = por %p52, %p53
      %p55 = scmp.ne.s32.totalorder %s47, %s50
      %p56 = scmp.eq.s32.totalorder %s16, 0
      %p57 = por %p55, %p56
      %p58 = scmp.ne.s32.totalorder %s47, %s50
      %p59 = scmp.eq.s32.totalorder %s21, 1
      %p60 = por %p58, %p59
      %p61 = scmp.ne.s32.totalorder %s50, %s51
      %p62 = scmp.eq.s32.totalorder %s21, 0
      %p63 = por %p61, %p62
      %p64 = scmp.ne.s32.totalorder %s50, %s51
      %p65 = scmp.eq.s32.totalorder %s22, 1
      %p66 = por %p64, %p65
      %p68 = scmp.ne.s32.totalorder %s51, %s67
      %p69 = scmp.eq.s32.totalorder %s22, 0
      %p70 = por %p68, %p69
      %s71 = ssub.s32 %s24, %s38
      %p72 = scmp.eq.s32.totalorder %s71, 0
      %s74 = sadd.s32 %s73, 1
      %s75 = scalar_select %p72, %s73, %s74
      %p78 = pneg %p72
      %p79 = scmp.eq.s32.totalorder %s16, 1
      %p80 = por %p78, %p79
      %p81 = scmp.ne.s32.totalorder %s73, %s76
      %p82 = scmp.eq.s32.totalorder %s16, 0
      %p83 = por %p81, %p82
      %p84 = scmp.ne.s32.totalorder %s73, %s76
      %p85 = scmp.eq.s32.totalorder %s21, 1
      %p86 = por %p84, %p85
      %p87 = scmp.ne.s32.totalorder %s76, %s77
      %p88 = scmp.eq.s32.totalorder %s21, 0
      %p89 = por %p87, %p88
      %p90 = scmp.ne.s32.totalorder %s76, %s77
      %p91 = scmp.eq.s32.totalorder %s22, 1
      %p92 = por %p90, %p91
      %p94 = scmp.ne.s32.totalorder %s77, %s93
      %p95 = scmp.eq.s32.totalorder %s22, 0
      %p96 = por %p94, %p95
      %s97 = ssub.s32 %s24, %s38
      %p98 = scmp.eq.s32.totalorder %s97, 0
      %s100 = sadd.s32 %s99, 1
      %s101 = scalar_select %p98, %s99, %s100
      %p104 = pneg %p98
      %p105 = scmp.eq.s32.totalorder %s16, 1
      %p106 = por %p104, %p105
      %p107 = scmp.ne.s32.totalorder %s99, %s102
      %p108 = scmp.eq.s32.totalorder %s16, 0
      %p109 = por %p107, %p108
      %p110 = scmp.ne.s32.totalorder %s99, %s102
      %p111 = scmp.eq.s32.totalorder %s21, 1
      %p112 = por %p110, %p111
      %p113 = scmp.ne.s32.totalorder %s102, %s103
      %p114 = scmp.eq.s32.totalorder %s21, 0
      %p115 = por %p113, %p114
      %p116 = scmp.ne.s32.totalorder %s102, %s103
      %p117 = scmp.eq.s32.totalorder %s22, 1
      %p118 = por %p116, %p117
      %p120 = scmp.ne.s32.totalorder %s103, %s119
      %p121 = scmp.eq.s32.totalorder %s22, 0
      %p122 = por %p120, %p121
      %s123 = ssub.s32 %s23, %s42
      %s124 = ssub.s32 %s24, %s38
      %s125 = sor.u32 %s123, %s124
      %s126 = ssub.s32 %s25, %s34
      %s127 = sor.u32 %s125, %s126
      %p128 = scmp.eq.s32.totalorder %s127, 0
      %s130 = sadd.s32 %s129, 1
      %s131 = scalar_select %p128, %s129, %s130
      %p134 = pneg %p128
      %p135 = scmp.eq.s32.totalorder %s16, 1
      %p136 = por %p134, %p135
      %p137 = scmp.ne.s32.totalorder %s129, %s132
      %p138 = scmp.eq.s32.totalorder %s16, 0
      %p139 = por %p137, %p138
      %p140 = scmp.ne.s32.totalorder %s129, %s132
      %p141 = scmp.eq.s32.totalorder %s21, 1
      %p142 = por %p140, %p141
      %p143 = scmp.ne.s32.totalorder %s132, %s133
      %p144 = scmp.eq.s32.totalorder %s21, 0
      %p145 = por %p143, %p144
      %p146 = scmp.ne.s32.totalorder %s132, %s133
      %p147 = scmp.eq.s32.totalorder %s22, 1
      %p148 = por %p146, %p147
      %p150 = scmp.ne.s32.totalorder %s133, %s149
      %p151 = scmp.eq.s32.totalorder %s22, 0
      %p152 = por %p150, %p151
      %p153 = scmp.le.s32.totalorder 1, %s16
      %p154 = scmp.lt.s32.totalorder %s16, 3
      %p155 = pnand %p153, %p154
      %p156 = pneg %p155
      // Predicated region
      $region9: #{tpu_custom_call.1} parent=5 // pred_check
        _
      $region10: #{tpu_custom_call.1} parent=5 // pred_check_branch
        %158 = sbr.rel (%p155) target = $region12
      $region11: #{tpu_custom_call.1} parent=5 // pred_region
        %s159 = ssub.s32 %s16, 1
        // Predicated region
        $region13: #{tpu_custom_call.1} parent=11 // pred_check
          %p160 = pneg %p89
        $region14: #{tpu_custom_call.1} parent=11 // pred_check_branch
          %162 = sbr.rel (%p160) target = $region16
        $region15: #{tpu_custom_call.1} parent=11 // pred_region
          %s164 = ssub.s32 64, 64
          %165 = vsyncadd [#allocation6], %s164
          %s166 = smul.addr %s27, 64
          %s167 = scalar_lea.hbm %s1, %s166
          %s169 = sshll.u32 [#allocation5], 4
          %s170 = int_to_ptr.vmem [resolvable:$true] %s169
          %172 = dma.hbm_to_vmem [thread:$0]  %s167, 64, %s170, [#allocation6]
        $region16: #{tpu_custom_call.1} parent=11 // pred_fallthru
          _
        // Predicated region
        $region17: #{tpu_custom_call.1} parent=11 // pred_check
          %p173 = pneg %p115
        $region18: #{tpu_custom_call.1} parent=11 // pred_check_branch
          %175 = sbr.rel (%p173) target = $region20
        $region19: #{tpu_custom_call.1} parent=11 // pred_region
          %s177 = ssub.s32 128, 128
          %178 = vsyncadd [#allocation6], %s177
          %s179 = smul.addr %s27, 128
          %s180 = scalar_lea.hbm %s2, %s179
          %s182 = sshll.u32 [#allocation7], 4
          %s183 = int_to_ptr.vmem [resolvable:$true] %s182
          %185 = dma.hbm_to_vmem [thread:$0]  %s180, 128, %s183, [#allocation6]
        $region20: #{tpu_custom_call.1} parent=11 // pred_fallthru
          _
      $region12: #{tpu_custom_call.1} parent=5 // pred_fallthru
        _
      %p186 = scmp.lt.s32.totalorder %s16, 2
      // Predicated region
      $region21: #{tpu_custom_call.1} parent=5 // pred_check
        %p187 = pneg %p186
      $region22: #{tpu_custom_call.1} parent=5 // pred_check_branch
        %189 = sbr.rel (%p187) target = $region24
      $region23: #{tpu_custom_call.1} parent=5 // pred_region
        // Predicated region
        $region25: #{tpu_custom_call.1} parent=23 // pred_check
          %p190 = pneg %p57
        $region26: #{tpu_custom_call.1} parent=23 // pred_check_branch
          %192 = sbr.rel (%p190) target = $region28
        $region27: #{tpu_custom_call.1} parent=23 // pred_region
          %s193 = sand.u32 %s47, 1
          %s194 = scalar_lea.sflag [#allocation3], %s193
          %s195 = sand.u32 %s47, 1
          %s196 = smul.addr %s195, 20
          %s197 = scalar_lea.vmem [#allocation2], %s196
          %s199 = ssub.s32 320, 320
          %200 = vsyncadd %s194, %s199
          %s201 = smul.addr %s23, 5
          %s202 = sadd.s32 %s25, %s201
          %s203 = smul.addr %s202, 64
          %s204 = scalar_lea.hbm %s0, %s203
          %s205 = sshll.u32 %s197, 4
          %s206 = int_to_ptr.vmem [resolvable:$true] %s205
          %211 = dma.hbm_to_vmem [thread:$0]  %s204, 320, %s206, %s194, 64, 64, 4
        $region28: #{tpu_custom_call.1} parent=23 // pred_fallthru
          _
      $region24: #{tpu_custom_call.1} parent=5 // pred_fallthru
        _
      %p212 = scmp.le.s32.totalorder 1, %s16
      %p213 = scmp.lt.s32.totalorder %s16, 3
      %p214 = pnand %p212, %p213
      %p215 = pneg %p214
      // Predicated region
      $region29: #{tpu_custom_call.1} parent=5 // pred_check
        _
      $region30: #{tpu_custom_call.1} parent=5 // pred_check_branch
        %217 = sbr.rel (%p214) target = $region32
      $region31: #{tpu_custom_call.1} parent=5 // pred_region
        %s218 = ssub.s32 %s16, 1
        %s219 = sand.u32 %s50, 1
        %s220 = scalar_lea.sflag [#allocation3], %s219
        %s221 = sand.u32 %s50, 1
        %s222 = smul.addr %s221, 20
        %s223 = scalar_lea.vmem [#allocation2], %s222
        // Predicated region
        $region33: #{tpu_custom_call.1} parent=31 // pred_check
          %p224 = pneg %p63
        $region34: #{tpu_custom_call.1} parent=31 // pred_check_branch
          %226 = sbr.rel (%p224) target = $region36
        $region35: #{tpu_custom_call.1} parent=31 // pred_region
          %227 = dma.done %s220, 320
        $region36: #{tpu_custom_call.1} parent=31 // pred_fallthru
          _
        // Predicated region
        $region37: #{tpu_custom_call.1} parent=31 // pred_check
          %p228 = pneg %p89
        $region38: #{tpu_custom_call.1} parent=31 // pred_check_branch
          %230 = sbr.rel (%p228) target = $region40
        $region39: #{tpu_custom_call.1} parent=31 // pred_region
          %231 = dma.done [#allocation6], 64
        $region40: #{tpu_custom_call.1} parent=31 // pred_fallthru
          _
        // Predicated region
        $region41: #{tpu_custom_call.1} parent=31 // pred_check
          %p232 = pneg %p115
        $region42: #{tpu_custom_call.1} parent=31 // pred_check_branch
          %234 = sbr.rel (%p232) target = $region44
        $region43: #{tpu_custom_call.1} parent=31 // pred_region
          %235 = dma.done [#allocation6], 128
        $region44: #{tpu_custom_call.1} parent=31 // pred_fallthru
          _
        %s236 = sand.u32 %s50, 1
        %s237 = scalar_lea.sflag [#allocation3], %s236
        %s238 = sand.u32 %s50, 1
        %s239 = smul.addr %s238, 20
        %s240 = scalar_lea.vmem [#allocation2], %s239
        %p241 = pneg %p63
        %p242 = pneg %p60
        %p243 = pneg %p89
        %p244 = pneg %p86
        %p245 = pneg %p115
        %p246 = pneg %p112
        %p247 = pneg %p145
        %p248 = pneg %p142
        %s249 = sand.u32 %s132, 1
        %s250 = scalar_lea.sflag [#allocation4], %s249
        %s251 = sand.u32 %s132, 1
        %s252 = smul.addr %s251, 8
        %s253 = scalar_lea.vmem [#allocation8], %s252
        %v255 = vld [vmem:[#allocation5] sm:$0xf]
        %v256 = vld [vmem:[%s223] sm:$0xf]
        %v257 = vld [vmem:[%s223 + $0x4] sm:$0xf]
        %v258 = vld [vmem:[%s223 + $0x8] sm:$0xf]
        %v259 = vld [vmem:[%s223 + $0xc] sm:$0xf]
        %v260 = vld [vmem:[%s223 + $0x10] sm:$0x3]
        %v261 = vld [vmem:[#allocation7] sm:$0xff]
        %263 = vset.pattern.permute.xlu0 0
        %264 = vperm.xlu0 %263, %v261
        %v265 = vpop.permute.xlu0 %264
        %v272 = vunpack.c.l.b16 %v256
        %v273 = vunpack.c.l.b16 %v257
        %v274 = vunpack.c.l.b16 %v258
        %v275 = vunpack.c.l.b16 %v259
        %v276 = vunpack.c.l.b16 %v260
        %v277 = vpack.c.b16 %v273, %v272
        %v278 = vpack.c.b16 %v275, %v274
        %v279 = vpack.c.b16 %v276, %v276
        %vm282 = vcmask 293888
        %v284 = vsel %vm282, %v255, 0
        %vm286 = vcmask 1041408
        %v288 = vsel %vm286, %v279, 0
        %290 = vmatprep.subr.bf16.mxu0 0
        %291 = vmatpush1.bf16.msra.mxu0 %v277
        %292 = vmatprep.subr.bf16.mxu0 0
        %293 = vmatpush1.bf16.msra.mxu0 %v278
        %294 = vmatprep.subr.bf16.mxu0 0
        %295 = vmatpush1.bf16.msra.mxu0 %v288
        %296 = vmatprep.subr.bf16.mxu0 0
        %297 = vmatpush1.bf16.msra.mxu0 0
        %298 = vmatprep.subr.bf16.mxu0 0
        %299 = vmatpush1.bf16.msra.mxu0 0
        %300 = vmatprep.subr.bf16.mxu0 0
        %301 = vmatpush1.bf16.msra.mxu0 0
        %302 = vmatprep.subr.bf16.mxu0 0
        %303 = vmatpush1.bf16.msra.mxu0 0
        %304 = vmatprep.subr.bf16.mxu0 0
        %305 = vmatpush1.bf16.msra.mxu0 0
        %306 = vmatprep.subr.bf16.mxu0 0
        %307 = vmatpush1.bf16.msra.mxu0 0
        %308 = vmatprep.subr.bf16.mxu0 0
        %309 = vmatpush1.bf16.msra.mxu0 0
        %310 = vmatprep.subr.bf16.mxu0 0
        %311 = vmatpush1.bf16.msra.mxu0 0
        %312 = vmatprep.subr.bf16.mxu0 0
        %313 = vmatpush1.bf16.msra.mxu0 0
        %314 = vmatprep.subr.bf16.mxu0 0
        %315 = vmatpush1.bf16.msra.mxu0 0
        %316 = vmatprep.subr.bf16.mxu0 0
        %317 = vmatpush1.bf16.msra.mxu0 0
        %318 = vmatprep.subr.bf16.mxu0 0
        %319 = vmatpush1.bf16.msra.mxu0 0
        %320 = vmatprep.subr.bf16.mxu0 0
        %321 = vmatpush1.bf16.msra.mxu0 0
        %322 = vmatprep.mubr.bf16.mxu0 0
        %323 = vmatmul.mubr.bf16.gmra.mrb[0].mxu0 %v284
        %v324 = vpop.f32.mrb[0].mxu0
        %v325 = vadd.f32 %v265, %v324
        %v326 = vpop.f32.mrb[0].mxu0
        %v327 = vpop.f32.mrb[0].mxu0
        %v328 = vpop.f32.mrb[0].mxu0
        %329 = vdwg.mxu0
        %v330 = vmul.f32 %v325, 0.1
        %v331 = vmax.f32 %v325, %v330
        %332 = vst [vmem:[%s253] sm:$0xff] %v331
        %s333 = sand.u32 %s132, 1
        %s334 = scalar_lea.sflag [#allocation4], %s333
        %s335 = sand.u32 %s132, 1
        %s336 = smul.addr %s335, 8
        %s337 = scalar_lea.vmem [#allocation8], %s336
        // Predicated region
        $region45: #{tpu_custom_call.1} parent=31 // pred_check
          %p338 = pneg %p142
        $region46: #{tpu_custom_call.1} parent=31 // pred_check_branch
          %340 = sbr.rel (%p338) target = $region48
        $region47: #{tpu_custom_call.1} parent=31 // pred_region
          %s342 = ssub.s32 128, 128
          %343 = vsyncadd %s334, %s342
          %s344 = sadd.s32 %s28, %s27
          %s345 = sadd.s32 %s344, %s26
          %s346 = smul.addr %s345, 128
          %s347 = scalar_lea.hbm %s3, %s346
          %s349 = sshll.u32 %s337, 4
          %s350 = int_to_ptr.vmem [resolvable:$true] %s349
          %352 = dma.vmem_to_hbm [thread:$0]  %s350, 128, %s347, %s334
        $region48: #{tpu_custom_call.1} parent=31 // pred_fallthru
          _
      $region32: #{tpu_custom_call.1} parent=5 // pred_fallthru
        _
      %p353 = scmp.le.s32.totalorder 2, %s16
      // Predicated region
      $region49: #{tpu_custom_call.1} parent=5 // pred_check
        %p354 = pneg %p353
      $region50: #{tpu_custom_call.1} parent=5 // pred_check_branch
        %356 = sbr.rel (%p354) target = $region52
      $region51: #{tpu_custom_call.1} parent=5 // pred_region
        %s357 = ssub.s32 %s16, 2
        // Predicated region
        $region53: #{tpu_custom_call.1} parent=51 // pred_check
          %p358 = pneg %p148
        $region54: #{tpu_custom_call.1} parent=51 // pred_check_branch
          %360 = sbr.rel (%p358) target = $region56
        $region55: #{tpu_custom_call.1} parent=51 // pred_region
          %s361 = sand.u32 %s133, 1
          %s362 = scalar_lea.sflag [#allocation4], %s361
          %s363 = sand.u32 %s133, 1
          %s364 = smul.addr %s363, 8
          %s365 = scalar_lea.vmem [#allocation8], %s364
          %366 = dma.done %s362, 128
        $region56: #{tpu_custom_call.1} parent=51 // pred_fallthru
          _
      $region52: #{tpu_custom_call.1} parent=5 // pred_fallthru
        _
    $region6: #{tpu_custom_call.1} parent=1 // loop_footer
      %s20 = sadd.s32 1, %s16
    $region7: #{tpu_custom_call.1} parent=1 // loop_footer_branch
      %15 = sbr.rel target = $region3
    $region8: #{tpu_custom_call.1} parent=1 // loop_exit
      _
    %367 = vsyncpa [#allocation3], 1
    %s368 = scalar_lea.sflag [#allocation3], 1
    %369 = vsyncpa %s368, 1
    %370 = vsyncpa [#allocation6], 1
    %371 = vsyncpa [#allocation4], 1
    %s372 = scalar_lea.sflag [#allocation4], 1
    %373 = vsyncpa %s372, 1

</llo_original>
